<compile_context>
chip_gen: v7x
topology: tpu7x:2x2x1
jax: 0.10.0
libtpu: 0.0.40
codegen_flags: <defaults>
</compile_context>

<pallas_src>
import math
from functools import partial

import jax
import jax.numpy as jnp
from jax.experimental import pallas as pl
from jax.experimental.pallas import tpu as pltpu


def _pos_emb_kernel(time_ref, freqs_ref, out_ref, *, half_dim: int):
    """Sinusoidal timestep embeddings for one batch tile.

    time_ref  : (TB, 1)        float32 VMEM ref   (timesteps for this tile)
    freqs_ref : (1, half_dim)  float32 VMEM ref   (precomputed, resident)
    out_ref   : (TB, dim)      float32 VMEM ref
    """
    # (TB, 1) * (1, half_dim) -> (TB, half_dim); pure VPU broadcast-multiply.
    args = time_ref[...] * freqs_ref[...]
    # Two direct stores instead of concatenate: each half goes straight from
    # its vregs to its lane range, no lane shuffle / temporary.
    out_ref[:, :half_dim] = jnp.sin(args)
    out_ref[:, half_dim:] = jnp.cos(args)


def positional_embeddings(
    time: jax.Array, *, timesteps: int, dim: int, block_b: int = 1024
) -> jax.Array:
    """time: (B,) int/float timesteps -> (B, dim) float32 embeddings.

    Note: `time` is cast to float32; exact for integer timesteps < 2^24
    (always true for diffusion schedules with ~1e3 steps).
    """
    assert dim % 2 == 0, "dim must be even"
    half_dim = dim // 2
    assert half_dim >= 2, "dim must be >= 4 (scale divides by half_dim - 1)"

    b = time.shape[0]

    # Static frequency table, computed once outside the kernel.
    scale = math.log(timesteps) / (half_dim - 1)
    freqs = jnp.exp(
        -scale * jnp.arange(half_dim, dtype=jnp.float32)
    ).reshape(1, half_dim)

    # Batch tile: whole batch if it fits one modest tile, otherwise a
    # multiple-of-8 tile with the batch padded up (padded rows sliced off).
    # Per-step f32 output buffer = tb * dim * 4 bytes; with double buffering
    # this stays far below the 32 MiB default scoped-VMEM limit even on v7x.
    if b <= block_b:
        tb = b
        b_pad = b
    else:
        tb = block_b  # multiple of 8
        b_pad = ((b + tb - 1) // tb) * tb

    time_2d = time.astype(jnp.float32).reshape(b, 1)
    if b_pad != b:
        time_2d = jnp.pad(time_2d, ((0, b_pad - b), (0, 0)))

    grid = (b_pad // tb,)

    out = pl.pallas_call(
        partial(_pos_emb_kernel, half_dim=half_dim),
        out_shape=jax.ShapeDtypeStruct((b_pad, dim), jnp.float32),
        grid=grid,
        in_specs=[
            pl.BlockSpec((tb, 1), lambda i: (i, 0)),          # per-tile timesteps
            pl.BlockSpec((1, half_dim), lambda i: (0, 0)),    # resident freqs
        ],
        out_specs=pl.BlockSpec((tb, dim), lambda i: (i, 0)),
        compiler_params=pltpu.CompilerParams(
            dimension_semantics=("parallel",),   # shard batch axis across TCs (v7x)
            vmem_limit_bytes=64 << 20,
        ),
    )(time_2d, freqs)

    return out[:b] if b_pad != b else out


def _reference(time: jax.Array, *, timesteps: int, dim: int) -> jax.Array:
    half_dim = dim // 2
    scale = math.log(timesteps) / (half_dim - 1)
    freqs = jnp.exp(-scale * jnp.arange(half_dim, dtype=jnp.float32))
    args = time.astype(jnp.float32)[:, None] * freqs[None, :]
    return jnp.concatenate([jnp.sin(args), jnp.cos(args)], axis=-1)


if __name__ == "__main__":
    TIMESTEPS = 1000
    DIM = 32
    BATCH = 8

    key = jax.random.PRNGKey(0)
    time = jax.random.randint(key, (BATCH,), 0, TIMESTEPS)

    out = positional_embeddings(time, timesteps=TIMESTEPS, dim=DIM)
    out = jax.block_until_ready(out)

    ref = _reference(time, timesteps=TIMESTEPS, dim=DIM)
    assert out.shape == (BATCH, DIM)
    assert jnp.allclose(out, ref, atol=1e-5, rtol=1e-5), "mismatch vs reference"

    print("KERNEL_OK")
</pallas_src>

<mosaic_0001>
module attributes {stable_mosaic.version = 11 : i64} {
  func.func @_pos_emb_kernel(%arg0: i32, %arg1: memref<8x1xf32, #tpu.memory_space<vmem>>, %arg2: memref<1x16xf32, #tpu.memory_space<vmem>>, %arg3: memref<8x32xf32, #tpu.memory_space<vmem>>) attributes {dimension_semantics = [#tpu.dimension_semantics<parallel>], iteration_bounds = array<i64: 1>, scalar_prefetch = 0 : i64, scratch_operands = 0 : i64, tpu.core_type = #tpu.core_type<tc>, window_params = [{transform_indices = @transform_0, window_bounds = array<i64: 8, 1>}, {pipeline_mode = #tpu.pipeline_mode<synchronous>, transform_indices = @transform_1, window_bounds = array<i64: 1, 16>}, {transform_indices = @transform_2, window_bounds = array<i64: 8, 32>}]} {
    %c0 = arith.constant 0 : index
    %c0_0 = arith.constant 0 : index
    %0 = vector.load %arg1[%c0, %c0_0] : memref<8x1xf32, #tpu.memory_space<vmem>>, vector<8x1xf32>
    %c0_1 = arith.constant 0 : index
    %c0_2 = arith.constant 0 : index
    %1 = vector.load %arg2[%c0_1, %c0_2] : memref<1x16xf32, #tpu.memory_space<vmem>>, vector<1x16xf32>
    %2 = vector.broadcast %0 : vector<8x1xf32> to vector<8x16xf32>
    %3 = vector.broadcast %1 : vector<1x16xf32> to vector<8x16xf32>
    %4 = arith.mulf %2, %3 : vector<8x16xf32>
    %5 = math.sin %4 : vector<8x16xf32>
    %c0_3 = arith.constant 0 : index
    %c0_4 = arith.constant 0 : index
    %6 = vector.load %arg3[%c0_3, %c0_4] : memref<8x32xf32, #tpu.memory_space<vmem>>, vector<8x16xf32>
    tpu.vector_store %arg3[%c0_3, %c0_4], %5 {strides = array<i32>} : memref<8x32xf32, #tpu.memory_space<vmem>>, vector<8x16xf32>,
    %7 = math.cos %4 : vector<8x16xf32>
    %c0_5 = arith.constant 0 : index
    %c16 = arith.constant 16 : index
    %8 = vector.load %arg3[%c0_5, %c16] : memref<8x32xf32, #tpu.memory_space<vmem>>, vector<8x16xf32>
    tpu.vector_store %arg3[%c0_5, %c16], %7 {strides = array<i32>} : memref<8x32xf32, #tpu.memory_space<vmem>>, vector<8x16xf32>,
    return
  }
  func.func @transform_0(%arg0: i32) -> (i32, i32) {
    %c0_i32 = arith.constant 0 : i32
    %c0_i32_0 = arith.constant 0 : i32
    return %arg0, %c0_i32 : i32, i32
  }
  func.func @transform_1(%arg0: i32) -> (i32, i32) {
    %c0_i32 = arith.constant 0 : i32
    %c0_i32_0 = arith.constant 0 : i32
    %c0_i32_1 = arith.constant 0 : i32
    return %c0_i32, %c0_i32_0 : i32, i32
  }
  func.func @transform_2(%arg0: i32) -> (i32, i32) {
    %c0_i32 = arith.constant 0 : i32
    %c0_i32_0 = arith.constant 0 : i32
    return %arg0, %c0_i32 : i32, i32
  }
}

</mosaic_0001>

<llo_original>
// kernel: tpu_custom_call.1
$region0: #{tpu_custom_call.1}
  #allocation0 [shape = 'u32[]', space=smem, size = 0x4, offset = 0x4, fixed_abs, tag = 'smem constant byte address 0x4 - core index']
  #allocation1 [shape = 'u32[144,128]{1,0:T(1,128)}', space=vmem, size = 0x12000, scoped, tag = 'internal scratch']
  %s0 = inlined_call_operand.hbm [shape: f32[8,1], index: 0, kind: input, shape index: {}]
  %s1 = inlined_call_operand.hbm [shape: f32[1,16], index: 1, kind: input, shape index: {}]
  %s2 = inlined_call_operand.hbm [shape: f32[8,32], index: 2, kind: output, shape index: {}]
  %s3 = sld [smem:[#allocation0]]
  $region26: #{tpu_custom_call.1} parent=0
    _
  %s5 = ssub.s32 1, %s3
  %s6 = scalar_select 0, %s5, %s3
  $region1: #{tpu_custom_call.1} parent=0
    #allocation2 [shape = 'u8[4096]{0}', space=vmem, size = 0x1000, scoped, tag = 'input window, operand 0, single buffered']
    #allocation3 [shape = 's32[1]{0}', space=sflag, size = 0x4, scoped, tag = 'scoped memory for tpu_custom_call.1']
    #allocation4 [shape = 's32[1]{0}', space=sflag, size = 0x4, scoped, tag = 'scoped memory for tpu_custom_call.1']
    #allocation5 [shape = 'u8[512]{0}', space=vmem, size = 0x400, scoped, tag = 'input window, operand 1, single buffered']
    #allocation6 [shape = 's32[1]{0}', space=sflag, size = 0x4, scoped, tag = 'scoped memory for tpu_custom_call.1']
    #allocation7 [shape = 'u8[4096]{0}', space=vmem, size = 0x1000, scoped, tag = 'output window, operand 0, single buffered']
    %7 = vsyncpa [#allocation3], 0
    %8 = vsyncpa [#allocation6], 0
    %9 = vsyncpa [#allocation4], 0
    // Predicated region
    $region2: #{tpu_custom_call.1} parent=1 // pred_check
      _
    $region3: #{tpu_custom_call.1} parent=1 // pred_check_branch
      %11 = sbr.rel (0) target = $region5
    $region4: #{tpu_custom_call.1} parent=1 // pred_region
      %s13 = ssub.s32 128, 128
      %14 = vsyncadd [#allocation3], %s13
      %s16 = sshll.u32 [#allocation2], 4
      %s17 = int_to_ptr.vmem [resolvable:$true] %s16
      %19 = dma.hbm_to_vmem [thread:$0]  %s0, 128, %s17, [#allocation3]
    $region5: #{tpu_custom_call.1} parent=1 // pred_fallthru
      _
    // Predicated region
    $region6: #{tpu_custom_call.1} parent=1 // pred_check
      _
    $region7: #{tpu_custom_call.1} parent=1 // pred_check_branch
      %21 = sbr.rel (0) target = $region9
    $region8: #{tpu_custom_call.1} parent=1 // pred_region
      %s23 = ssub.s32 16, 16
      %24 = vsyncadd [#allocation6], %s23
      %s26 = sshll.u32 [#allocation5], 4
      %s27 = int_to_ptr.vmem [resolvable:$true] %s26
      %29 = dma.hbm_to_vmem [thread:$0]  %s1, 16, %s27, [#allocation6]
    $region9: #{tpu_custom_call.1} parent=1 // pred_fallthru
      _
    // Predicated region
    $region10: #{tpu_custom_call.1} parent=1 // pred_check
      _
    $region11: #{tpu_custom_call.1} parent=1 // pred_check_branch
      %31 = sbr.rel (0) target = $region13
    $region12: #{tpu_custom_call.1} parent=1 // pred_region
      %32 = dma.done [#allocation3], 128
    $region13: #{tpu_custom_call.1} parent=1 // pred_fallthru
      _
    // Predicated region
    $region14: #{tpu_custom_call.1} parent=1 // pred_check
      _
    $region15: #{tpu_custom_call.1} parent=1 // pred_check_branch
      %34 = sbr.rel (0) target = $region17
    $region16: #{tpu_custom_call.1} parent=1 // pred_region
      %35 = dma.done [#allocation6], 16
    $region17: #{tpu_custom_call.1} parent=1 // pred_fallthru
      _
    %v36 = vld [vmem:[#allocation2] sm:$0xff]
    %v37 = vld [vmem:[#allocation5] sm:$0x1]
    %39 = vset.pattern.permute.xlu0 0
    %40 = vperm.xlu0 %39, %v36
    %v41 = vpop.permute.xlu0 %40
    %v44 = vlaneseq
    %v45 = vshrl.u32 %v44, 7
    %v46 = vsub.s32 0, %v45
    %v47 = vrot.slane %v37, %v46
    %v49 = vmul.f32 %v41, %v47
    %v50 = vand.u32 2147483647, %v49
    %vm51 = vcmp.le.f32.partialorder %v50, 0.7853982
    %vm52 = vcmp.lt.s32.totalorder %v49, 0
    %v53 = vand.u32 %v49, 2139095040
    %v54 = vshrl.u32 %v53, 23
    %v55 = vsub.s32 %v54, 127
    %v56 = vand.u32 2147483647, %v49
    %v57 = vand.u32 %v56, 8388607
    %v58 = vor.u32 %v57, 8388608
    %v59 = vsub.s32 0, %v58
    %v60 = vadd.s32 %v55, 1
    %vm61 = vcmp.gt.s32.totalorder %v60, 0
    %v62 = vsel %vm61, %v60, 0
    %v63 = vshrl.u32 %v62, 5
    %v64 = vand.u32 %v62, 31
    %v65 = vsub.s32 32, %v64
    %v66 = vshrl.u32 683565275, %v65
    %v67 = vshll.u32 683565275, %v64
    %v68 = vshrl.u32 2475754826, %v65
    %v69 = vor.u32 %v67, %v68
    %v70 = vshll.u32 2475754826, %v64
    %v71 = vshrl.u32 2131351028, %v65
    %v72 = vor.u32 %v70, %v71
    %v73 = vshll.u32 2131351028, %v64
    %v74 = vshrl.u32 2102212464, %v65
    %v75 = vor.u32 %v73, %v74
    %v76 = vshll.u32 2102212464, %v64
    %v77 = vshrl.u32 920167782, %v65
    %v78 = vor.u32 %v76, %v77
    %v79 = vshll.u32 920167782, %v64
    %v80 = vshrl.u32 1326507024, %v65
    %v81 = vor.u32 %v79, %v80
    %vm82 = vcmp.lt.s32.totalorder %v63, 1
    %vm83 = vcmp.lt.s32.totalorder %v63, 2
    %vm84 = vcmp.lt.s32.totalorder %v63, 3
    %vm85 = vcmp.lt.s32.totalorder %v63, 4
    %v86 = vsel %vm82, %v66, %v69
    %v87 = vsel %vm85, %v75, 2102212464
    %v88 = vsel %vm84, %v72, %v87
    %v89 = vsel %vm83, %v86, %v88
    %v90 = vsel %vm82, %v69, %v72
    %v91 = vsel %vm85, %v78, 920167782
    %v92 = vsel %vm84, %v75, %v91
    %v93 = vsel %vm83, %v90, %v92
    %v94 = vsel %vm82, %v72, %v75
    %v95 = vsel %vm85, %v81, 1326507024
    %v96 = vsel %vm84, %v78, %v95
    %v97 = vsel %vm83, %v94, %v96
    %v98 = vshll.u32 %v58, 8
    %v99 = vmul.u32.u64.compose %v98, %v97
    %v100 = vextract.low.u32 %v99
    %v101 = vextract.high.u32 %v99
    %v102 = vmul.u32.u64.compose %v98, %v93
    %v103 = vextract.low.u32 %v102
    %v104 = vextract.high.u32 %v102
    %v105 = vmul.u32 %v98, %v89
    %v106 = vadd.s32 %v101, %v103
    %vm107 = vc.u32 %v101, %v103
    %v108 = vadd.s32 %v104, 1
    %v109 = vsel %vm107, %v108, %v104
    %v110 = vadd.s32 %v105, %v109
    %v111 = vadd.s32 %v110, 536870912
    %v112 = vshrl.u32 %v111, 30
    %v113 = vshll.u32 %v112, 30
    %v114 = vsub.s32 %v110, %v113
    %vm115 = vcmp.lt.s32.totalorder %v114, 0
    %v116 = vsub.s32 0, %v114
    %v117 = vsel %vm115, %v116, %v114
    %v118 = vclz %v117
    %v119 = vsub.s32 %v118, 2
    %vm120 = vcmp.gt.s32.totalorder 0, %v119
    %v121 = vsel %vm120, 0, %v119
    %v122 = vsub.s32 32, %v121
    %v123 = vshll.u32 %v114, %v121
    %v124 = vshrl.u32 %v106, %v122
    %v125 = vor.u32 %v123, %v124
    %v126 = vsub.s32 4294967266, %v121
    %v127 = vadd.s32 %v126, 127
    %v128 = vshll.u32 %v127, 23
    %v129 = vor.u32 4788187, %v128
    %v130 = vand.u32 2147483647, %v129
    %v132 = vcvt.s32.f32 %v125
    %v133 = vmul.f32 %v132, %v130
    %v134 = vxor.u32 %v133, 2147483648
    %v135 = vsel %vm52, %v134, %v133
    %v136 = vsub.s32 4, %v112
    %v137 = vsel %vm52, %v136, %v112
    %v138 = vsel %vm51, %v49, %v135
    %v139 = vsel %vm51, 0, %v137
    %v140 = vcosq.f32.pop %v138
    %v141 = vsinq.f32.pop %v138
    %vm142 = vweird.f32 %v49
    %v143 = vadd.s32 %v139, 3
    %v144 = vand.u32 %v143, 3
    %vm145 = vcmp.lt.s32.totalorder %v144, 2
    %vm146 = vcmp.eq.s32.totalorder %v144, 0
    %v147 = vxor.u32 %v141, 2147483648
    %v148 = vsel %vm146, %v140, %v147
    %vm149 = vcmp.eq.s32.totalorder %v144, 2
    %v150 = vxor.u32 %v140, 2147483648
    %v151 = vsel %vm149, %v150, %v141
    %v152 = vsel %vm145, %v148, %v151
    %v153 = vsel %vm142, nan, %v152
    %vm154 = vcmask 130048
    %155 = vst.msk [vmem:[#allocation7] sm:$0xff] %vm154, %v153
    %v156 = vand.u32 2147483647, %v49
    %vm157 = vcmp.le.f32.partialorder %v156, 0.7853982
    %vm158 = vcmp.lt.s32.totalorder %v49, 0
    %v159 = vand.u32 %v49, 2139095040
    %v160 = vshrl.u32 %v159, 23
    %v161 = vsub.s32 %v160, 127
    %v162 = vand.u32 2147483647, %v49
    %v163 = vand.u32 %v162, 8388607
    %v164 = vor.u32 %v163, 8388608
    %v165 = vsub.s32 0, %v164
    %v166 = vadd.s32 %v161, 1
    %vm167 = vcmp.gt.s32.totalorder %v166, 0
    %v168 = vsel %vm167, %v166, 0
    %v169 = vshrl.u32 %v168, 5
    %v170 = vand.u32 %v168, 31
    %v171 = vsub.s32 32, %v170
    %v172 = vshrl.u32 683565275, %v171
    %v173 = vshll.u32 683565275, %v170
    %v174 = vshrl.u32 2475754826, %v171
    %v175 = vor.u32 %v173, %v174
    %v176 = vshll.u32 2475754826, %v170
    %v177 = vshrl.u32 2131351028, %v171
    %v178 = vor.u32 %v176, %v177
    %v179 = vshll.u32 2131351028, %v170
    %v180 = vshrl.u32 2102212464, %v171
    %v181 = vor.u32 %v179, %v180
    %v182 = vshll.u32 2102212464, %v170
    %v183 = vshrl.u32 920167782, %v171
    %v184 = vor.u32 %v182, %v183
    %v185 = vshll.u32 920167782, %v170
    %v186 = vshrl.u32 1326507024, %v171
    %v187 = vor.u32 %v185, %v186
    %vm188 = vcmp.lt.s32.totalorder %v169, 1
    %vm189 = vcmp.lt.s32.totalorder %v169, 2
    %vm190 = vcmp.lt.s32.totalorder %v169, 3
    %vm191 = vcmp.lt.s32.totalorder %v169, 4
    %v192 = vsel %vm188, %v172, %v175
    %v193 = vsel %vm191, %v181, 2102212464
    %v194 = vsel %vm190, %v178, %v193
    %v195 = vsel %vm189, %v192, %v194
    %v196 = vsel %vm188, %v175, %v178
    %v197 = vsel %vm191, %v184, 920167782
    %v198 = vsel %vm190, %v181, %v197
    %v199 = vsel %vm189, %v196, %v198
    %v200 = vsel %vm188, %v178, %v181
    %v201 = vsel %vm191, %v187, 1326507024
    %v202 = vsel %vm190, %v184, %v201
    %v203 = vsel %vm189, %v200, %v202
    %v204 = vshll.u32 %v164, 8
    %v205 = vmul.u32.u64.compose %v204, %v203
    %v206 = vextract.low.u32 %v205
    %v207 = vextract.high.u32 %v205
    %v208 = vmul.u32.u64.compose %v204, %v199
    %v209 = vextract.low.u32 %v208
    %v210 = vextract.high.u32 %v208
    %v211 = vmul.u32 %v204, %v195
    %v212 = vadd.s32 %v207, %v209
    %vm213 = vc.u32 %v207, %v209
    %v214 = vadd.s32 %v210, 1
    %v215 = vsel %vm213, %v214, %v210
    %v216 = vadd.s32 %v211, %v215
    %v217 = vadd.s32 %v216, 536870912
    %v218 = vshrl.u32 %v217, 30
    %v219 = vshll.u32 %v218, 30
    %v220 = vsub.s32 %v216, %v219
    %vm221 = vcmp.lt.s32.totalorder %v220, 0
    %v222 = vsub.s32 0, %v220
    %v223 = vsel %vm221, %v222, %v220
    %v224 = vclz %v223
    %v225 = vsub.s32 %v224, 2
    %vm226 = vcmp.gt.s32.totalorder 0, %v225
    %v227 = vsel %vm226, 0, %v225
    %v228 = vsub.s32 32, %v227
    %v229 = vshll.u32 %v220, %v227
    %v230 = vshrl.u32 %v212, %v228
    %v231 = vor.u32 %v229, %v230
    %v232 = vsub.s32 4294967266, %v227
    %v233 = vadd.s32 %v232, 127
    %v234 = vshll.u32 %v233, 23
    %v235 = vor.u32 4788187, %v234
    %v236 = vand.u32 2147483647, %v235
    %v238 = vcvt.s32.f32 %v231
    %v239 = vmul.f32 %v238, %v236
    %v240 = vxor.u32 %v239, 2147483648
    %v241 = vsel %vm158, %v240, %v239
    %v242 = vsub.s32 4, %v218
    %v243 = vsel %vm158, %v242, %v218
    %v244 = vsel %vm157, %v49, %v241
    %v245 = vsel %vm157, 0, %v243
    %v246 = vcosq.f32.pop %v244
    %v247 = vsinq.f32.pop %v244
    %vm248 = vweird.f32 %v49
    %v249 = vand.u32 %v245, 3
    %vm250 = vcmp.lt.s32.totalorder %v249, 2
    %vm251 = vcmp.eq.s32.totalorder %v249, 0
    %v252 = vxor.u32 %v247, 2147483648
    %v253 = vsel %vm251, %v246, %v252
    %vm254 = vcmp.eq.s32.totalorder %v249, 2
    %v255 = vxor.u32 %v246, 2147483648
    %v256 = vsel %vm254, %v255, %v247
    %v257 = vsel %vm250, %v253, %v256
    %v258 = vsel %vm248, nan, %v257
    %260 = vrot.lane.b32.xlu0 %v258, 16
    %v261 = vpop.permute.xlu0 %260
    %vm263 = vcmask 261248
    %264 = vst.msk [vmem:[#allocation7] sm:$0xff] %vm263, %v261
    // Predicated region
    $region18: #{tpu_custom_call.1} parent=1 // pred_check
      _
    $region19: #{tpu_custom_call.1} parent=1 // pred_check_branch
      %266 = sbr.rel (0) target = $region21
    $region20: #{tpu_custom_call.1} parent=1 // pred_region
      %s268 = ssub.s32 128, 128
      %269 = vsyncadd [#allocation4], %s268
      %s271 = sshll.u32 [#allocation7], 4
      %s272 = int_to_ptr.vmem [resolvable:$true] %s271
      %274 = dma.vmem_to_hbm [thread:$0]  %s272, 128, %s2, [#allocation4]
    $region21: #{tpu_custom_call.1} parent=1 // pred_fallthru
      _
    // Predicated region
    $region22: #{tpu_custom_call.1} parent=1 // pred_check
      _
    $region23: #{tpu_custom_call.1} parent=1 // pred_check_branch
      %276 = sbr.rel (0) target = $region25
    $region24: #{tpu_custom_call.1} parent=1 // pred_region
      %277 = dma.done [#allocation4], 128
    $region25: #{tpu_custom_call.1} parent=1 // pred_fallthru
      _
    %278 = vsyncpa [#allocation3], 1
    %279 = vsyncpa [#allocation6], 1
    %280 = vsyncpa [#allocation4], 1

</llo_original>
